<compile_context>
chip_gen: v7x
topology: tpu7x:2x2x1
jax: 0.10.0
libtpu: 0.0.40
codegen_flags: <defaults>
</compile_context>

<pallas_src>
import functools

import jax
import jax.numpy as jnp
from jax.experimental import pallas as pl
from jax.experimental.pallas import tpu as pltpu

LANE = 128


def _pad_to_lane(n: int) -> int:
    return max(LANE, ((n + LANE - 1) // LANE) * LANE)


# ---------------------------------------------------------------------------
# Kernel 1 (default): fully precomposed linear chain -> one MXU matmul.
# ---------------------------------------------------------------------------
def precomposed_kernel(x_ref, w_ref, b_ref, out_ref):
    out_ref[...] = (
        jnp.dot(x_ref[...], w_ref[...], preferred_element_type=jnp.float32)
        + b_ref[...]
    ).astype(out_ref.dtype)


# ---------------------------------------------------------------------------
# Kernel 2 (general path, materializes the level-0 outputs; kept for when
# non-linear backbones are substituted).  Both D-deep matmuls share one
# 256-lane RHS; inv_folds and every bias are pre-folded host-side.
# ---------------------------------------------------------------------------
def fused_kernel(x_ref, wcat_ref, w1a_ref, bcat_ref, out_ref, *, npad: int):
    x = x_ref[...]                                                    # [B, D] bf16
    # one 256-lane RHS: [ level-0 slab (all folds x models) | level-1 x-term ]
    t = (jnp.dot(x, wcat_ref[...], preferred_element_type=jnp.float32)
         + bcat_ref[...])                                             # [B, Npad+Kpad] f32
    stacked = t[:, :npad]            # level-0 preds for all folds (bias included)
    xw1b_b1 = t[:, npad:]            # fold-invariant level-1 x-term + b1
    preds = jnp.dot(stacked.astype(jnp.bfloat16), w1a_ref[...],
                    preferred_element_type=jnp.float32)               # [B, Kpad] f32
    out_ref[...] = (preds + xw1b_b1).astype(out_ref.dtype)


# ---------------------------------------------------------------------------
# One-time weight packing (run ONCE, outside the per-call path).
# ---------------------------------------------------------------------------
def prepare_precomposed(w_base, b_base, w1a, w1b, b1):
    """w_base: [F,D,MK]; b_base: [F,1,MK]; w1a: [MK,K]; w1b: [D,K]; b1: [1,K]."""
    F, D, MK = w_base.shape
    K = w1a.shape[1]
    Kpad = _pad_to_lane(K)
    inv_f = 1.0 / F
    # f32 precompose -> no lossy bf16 intermediate anywhere in the chain.
    w_eff = jnp.einsum('fdm,mk->dk', w_base, w1a) * inv_f + w1b              # [D, K]
    b_eff = (b_base.reshape(F, MK) @ w1a).sum(0, keepdims=True) * inv_f + b1  # [1, K]
    w_eff_p = jnp.zeros((D, Kpad), jnp.bfloat16).at[:, :K].set(
        w_eff.astype(jnp.bfloat16))
    b_eff_p = jnp.zeros((1, Kpad), jnp.float32).at[:, :K].set(b_eff)
    return w_eff_p, b_eff_p


def prepare_fused(w_base, b_base, w1a, w1b, b1):
    F, D, MK = w_base.shape
    K = w1a.shape[1]
    N = F * MK
    Npad = _pad_to_lane(N)
    Kpad = _pad_to_lane(K)
    inv_f = 1.0 / F

    # [ level-0 slab (fold-major) | level-1 x-term ]: one lane-dense bf16 RHS.
    w_all = jnp.transpose(w_base, (1, 0, 2)).reshape(D, N)
    w_cat = jnp.zeros((D, Npad + Kpad), jnp.bfloat16)
    w_cat = w_cat.at[:, :N].set(w_all.astype(jnp.bfloat16))
    w_cat = w_cat.at[:, Npad:Npad + K].set(w1b.astype(jnp.bfloat16))

    # single concatenated f32 bias slab: [ b_all | b1 ].
    b_cat = jnp.zeros((1, Npad + Kpad), jnp.float32)
    b_cat = b_cat.at[:, :N].set(b_base.reshape(1, N))
    b_cat = b_cat.at[:, Npad:Npad + K].set(b1.reshape(1, K))

    # level-1 preds weight replicated across folds with 1/F folded in
    # (sum_f(stacked_f @ w1a)/F == stacked_all @ tile_F(w1a/F)).
    w1a_rep = jnp.tile(w1a * inv_f, (F, 1))
    w1a_p = jnp.zeros((Npad, Kpad), jnp.bfloat16).at[:N, :K].set(
        w1a_rep.astype(jnp.bfloat16))
    return w_cat, w1a_p, b_cat, Npad


# ---------------------------------------------------------------------------
# Forward wrappers (jitted; only x reshaping/cast + the pallas_call per call).
# Everything fits in VMEM in one shot -> empty grid, single invocation.
# TODO(synk): at production B/D, reintroduce a ("parallel" B-tile,
# "arbitrary" D-tile) grid with an f32 accumulator scratch; size the D tile
# against v7x's 64 MiB VMEM (32 MiB default scoped, set vmem_limit_bytes) and
# mark the batch axis "parallel" so v7x's second TensorCore is used.
# ---------------------------------------------------------------------------
_VMEM = pl.BlockSpec(memory_space=pltpu.MemorySpace.VMEM)


@functools.partial(jax.jit, static_argnames=("k",))
def forward_precomposed(x_nchw, w_eff_p, b_eff_p, k):
    B = x_nchw.shape[0]
    D = w_eff_p.shape[0]
    x = x_nchw.reshape(B, D).astype(jnp.bfloat16)
    out = pl.pallas_call(
        precomposed_kernel,
        out_shape=jax.ShapeDtypeStruct((B, w_eff_p.shape[1]), jnp.float32),
        in_specs=[_VMEM, _VMEM, _VMEM],
        out_specs=_VMEM,
    )(x, w_eff_p, b_eff_p)
    return out[:, :k]


@functools.partial(jax.jit, static_argnames=("npad", "k"))
def forward_fused(x_nchw, w_cat, w1a_p, b_cat, npad, k):
    B = x_nchw.shape[0]
    D = w_cat.shape[0]
    x = x_nchw.reshape(B, D).astype(jnp.bfloat16)
    out = pl.pallas_call(
        functools.partial(fused_kernel, npad=npad),
        out_shape=jax.ShapeDtypeStruct((B, w1a_p.shape[1]), jnp.float32),
        in_specs=[_VMEM, _VMEM, _VMEM, _VMEM],
        out_specs=_VMEM,
    )(x, w_cat, w1a_p, b_cat)
    return out[:, :k]


def reference_all_folds(x_nchw, w_base, b_base, w1a, w1b, b1):
    """Pure-JAX f32 mirror of StackedEnsemble._predict_all_folds semantics."""
    B = x_nchw.shape[0]
    x = x_nchw.reshape(B, -1)
    outs = []
    for f in range(w_base.shape[0]):
        stacked = x @ w_base[f] + b_base[f]      # concat of base-model preds
        lvl1 = stacked @ w1a + x @ w1b + b1      # level1(concat(stacked, x))
        outs.append(lvl1)
    return jnp.stack(outs).mean(axis=0)


if __name__ == "__main__":
    # Small deterministic setup.
    B, C, H, W = 2, 4, 16, 16
    D = C * H * W                  # 1024
    n_models, n_folds, K = 2, 3, 8
    MK = n_models * K

    key = jax.random.PRNGKey(0)
    kx, kwb, kbb, kw1a, kw1b, kb1 = jax.random.split(key, 6)

    x = jax.random.normal(kx, (B, C, H, W), dtype=jnp.float32)

    # Base (level-0) weights: per fold, per model Linear(D->K), stacked along
    # the output-feature axis so x @ w_base[f] == concat_m(model_m_f(x)).
    w_base = jax.random.normal(kwb, (n_folds, D, MK), dtype=jnp.float32) * 0.02
    b_base = jax.random.normal(kbb, (n_folds, 1, MK), dtype=jnp.float32) * 0.02

    # Level-1 Linear(MK + D -> K), split into the preds-part and the x-part.
    w1a = jax.random.normal(kw1a, (MK, K), dtype=jnp.float32) * 0.1
    w1b = jax.random.normal(kw1b, (D, K), dtype=jnp.float32) * 0.02
    b1 = jax.random.normal(kb1, (1, K), dtype=jnp.float32) * 0.02

    # ---- one-time packing (hoisted out of the per-call path) ---------------
    w_eff_p, b_eff_p = prepare_precomposed(w_base, b_base, w1a, w1b, b1)
    w_cat, w1a_p, b_cat, Npad = prepare_fused(w_base, b_base, w1a, w1b, b1)

    ref = reference_all_folds(x, w_base, b_base, w1a, w1b, b1)

    # Default path: fully precomposed single-matmul kernel.
    out = jax.block_until_ready(forward_precomposed(x, w_eff_p, b_eff_p, K))
    assert out.shape == (B, K)
    assert jnp.allclose(out, ref, atol=2e-2, rtol=2e-2), \
        "precomposed kernel mismatch vs reference"

    # General path: fused 256-lane-RHS kernel (level-0 outputs materialized).
    out_f = jax.block_until_ready(forward_fused(x, w_cat, w1a_p, b_cat, Npad, K))
    assert out_f.shape == (B, K)
    assert jnp.allclose(out_f, ref, atol=3e-2, rtol=3e-2), \
        "fused kernel mismatch vs reference"

    # TODO(synk): BEST_FOLD / WEIGHTED strategies are host-side fold selection /
    # scalar re-weighting of the same hot path; only 'all_folds' is kerneled.
    # TODO(synk): real BaseLearner backbones (ResNet9 / vit_b_16 + bilinear
    # 224x224 resize) have no clean single-kernel Pallas equivalent and are
    # synthesized as linear heads on flattened x; the fold collapse and the
    # f32 precompose above are only valid because those sub-models are linear.
    print("KERNEL_OK")
</pallas_src>

<mosaic_0001>
module attributes {stable_mosaic.version = 11 : i64} {
  func.func @precomposed_kernel(%arg0: memref<2x1024xbf16, #tpu.memory_space<vmem>>, %arg1: memref<1024x128xbf16, #tpu.memory_space<vmem>>, %arg2: memref<1x128xf32, #tpu.memory_space<vmem>>, %arg3: memref<2x128xf32, #tpu.memory_space<vmem>>) attributes {dimension_semantics = [], scalar_prefetch = 0 : i64, scratch_operands = 0 : i64, tpu.core_type = #tpu.core_type<tc>} {
    %c0 = arith.constant 0 : index
    %c0_0 = arith.constant 0 : index
    %0 = vector.load %arg0[%c0, %c0_0] : memref<2x1024xbf16, #tpu.memory_space<vmem>>, vector<2x1024xbf16>
    %c0_1 = arith.constant 0 : index
    %c0_2 = arith.constant 0 : index
    %1 = vector.load %arg1[%c0_1, %c0_2] : memref<1024x128xbf16, #tpu.memory_space<vmem>>, vector<1024x128xbf16>
    %cst = arith.constant dense<0.000000e+00> : vector<2x128xf32>
    %2 = tpu.matmul %0, %1, %cst {dimension_numbers = #tpu.dot_dimension_numbers<[1], [0], [0], [1], [0, 0, 1, 1], [], []>} : vector<2x1024xbf16>, vector<1024x128xbf16>, vector<2x128xf32> -> vector<2x128xf32>
    %c0_3 = arith.constant 0 : index
    %c0_4 = arith.constant 0 : index
    %3 = vector.load %arg2[%c0_3, %c0_4] : memref<1x128xf32, #tpu.memory_space<vmem>>, vector<1x128xf32>
    %4 = vector.broadcast %3 : vector<1x128xf32> to vector<2x128xf32>
    %5 = arith.addf %2, %4 : vector<2x128xf32>
    %c0_5 = arith.constant 0 : index
    %c0_6 = arith.constant 0 : index
    %6 = vector.load %arg3[%c0_5, %c0_6] : memref<2x128xf32, #tpu.memory_space<vmem>>, vector<2x128xf32>
    tpu.vector_store %arg3[%c0_5, %c0_6], %5 {strides = array<i32>} : memref<2x128xf32, #tpu.memory_space<vmem>>, vector<2x128xf32>,
    return
  }
}

</mosaic_0001>

<llo_original>
// kernel: forward_precomposed.1
$region0: #{forward_precomposed.1}
  #allocation0 [shape = 'u32[]', space=smem, size = 0x4, offset = 0x4, fixed_abs, tag = 'smem constant byte address 0x4 - core index']
  #allocation1 [shape = 'u32[144,128]{1,0:T(1,128)}', space=vmem, size = 0x12000, scoped, tag = 'internal scratch']
  %s0 = inlined_call_operand.vmem [shape: bf16[2,1024], index: 0, kind: input, shape index: {}]
  %s1 = inlined_call_operand.hbm [shape: bf16[1024,128], index: 1, kind: input, shape index: {}]
  %s2 = inlined_call_operand.vmem [shape: f32[1,128], index: 2, kind: input, shape index: {}]
  %s3 = inlined_call_operand.hbm [shape: f32[2,128], index: 3, kind: output, shape index: {}]
  %s4 = sld [smem:[#allocation0]]
  $region26: #{forward_precomposed.1} parent=0
    _
  %s6 = ssub.s32 1, %s4
  %s7 = scalar_select 0, %s6, %s4
  $region1: #{forward_precomposed.1} parent=0
    #allocation2 [shape = 'u8[262144]{0}', space=vmem, size = 0x40000, scoped, tag = 'input window, operand 1, single buffered']
    #allocation3 [shape = 's32[1]{0}', space=sflag, size = 0x4, scoped, tag = 'scoped memory for forward_precomposed.1']
    #allocation4 [shape = 's32[1]{0}', space=sflag, size = 0x4, scoped, tag = 'scoped memory for forward_precomposed.1']
    #allocation5 [shape = 'u8[1024]{0}', space=vmem, size = 0x400, scoped, tag = 'output window, operand 0, single buffered']
    %8 = vsyncpa [#allocation3], 0
    %9 = vsyncpa [#allocation4], 0
    // Predicated region
    $region2: #{forward_precomposed.1} parent=1 // pred_check
      _
    $region3: #{forward_precomposed.1} parent=1 // pred_check_branch
      %11 = sbr.rel (0) target = $region5
    $region4: #{forward_precomposed.1} parent=1 // pred_region
      _
    $region5: #{forward_precomposed.1} parent=1 // pred_fallthru
      _
    // Predicated region
    $region6: #{forward_precomposed.1} parent=1 // pred_check
      _
    $region7: #{forward_precomposed.1} parent=1 // pred_check_branch
      %13 = sbr.rel (0) target = $region9
    $region8: #{forward_precomposed.1} parent=1 // pred_region
      %s15 = ssub.s32 8192, 8192
      %16 = vsyncadd [#allocation3], %s15
      %s17 = sshll.u32 [#allocation2], 4
      %s18 = int_to_ptr.vmem [resolvable:$true] %s17
      %23 = dma.hbm_to_vmem [thread:$0]  %s1, 8192, %s18, [#allocation3], 64, 64, 4
    $region9: #{forward_precomposed.1} parent=1 // pred_fallthru
      _
    // Predicated region
    $region10: #{forward_precomposed.1} parent=1 // pred_check
      _
    $region11: #{forward_precomposed.1} parent=1 // pred_check_branch
      %25 = sbr.rel (0) target = $region13
    $region12: #{forward_precomposed.1} parent=1 // pred_region
      _
    $region13: #{forward_precomposed.1} parent=1 // pred_fallthru
      _
    // Predicated region
    $region14: #{forward_precomposed.1} parent=1 // pred_check
      _
    $region15: #{forward_precomposed.1} parent=1 // pred_check_branch
      %27 = sbr.rel (0) target = $region17
    $region16: #{forward_precomposed.1} parent=1 // pred_region
      %28 = dma.done [#allocation3], 8192
    $region17: #{forward_precomposed.1} parent=1 // pred_fallthru
      _
    %v30 = vld [vmem:[%s0] sm:$0xff]
    %v31 = vld [vmem:[#allocation2] sm:$0xf]
    %v32 = vld [vmem:[#allocation2 + $0x4] sm:$0xf]
    %v33 = vld [vmem:[#allocation2 + $0x8] sm:$0xf]
    %v34 = vld [vmem:[#allocation2 + $0xc] sm:$0xf]
    %v35 = vld [vmem:[#allocation2 + $0x10] sm:$0xf]
    %v36 = vld [vmem:[#allocation2 + $0x14] sm:$0xf]
    %v37 = vld [vmem:[#allocation2 + $0x18] sm:$0xf]
    %v38 = vld [vmem:[#allocation2 + $0x1c] sm:$0xf]
    %v39 = vld [vmem:[#allocation2 + $0x20] sm:$0xf]
    %v40 = vld [vmem:[#allocation2 + $0x24] sm:$0xf]
    %v41 = vld [vmem:[#allocation2 + $0x28] sm:$0xf]
    %v42 = vld [vmem:[#allocation2 + $0x2c] sm:$0xf]
    %v43 = vld [vmem:[#allocation2 + $0x30] sm:$0xf]
    %v44 = vld [vmem:[#allocation2 + $0x34] sm:$0xf]
    %v45 = vld [vmem:[#allocation2 + $0x38] sm:$0xf]
    %v46 = vld [vmem:[#allocation2 + $0x3c] sm:$0xf]
    %v47 = vld [vmem:[#allocation2 + $0x40] sm:$0xf]
    %v48 = vld [vmem:[#allocation2 + $0x44] sm:$0xf]
    %v49 = vld [vmem:[#allocation2 + $0x48] sm:$0xf]
    %v50 = vld [vmem:[#allocation2 + $0x4c] sm:$0xf]
    %v51 = vld [vmem:[#allocation2 + $0x50] sm:$0xf]
    %v52 = vld [vmem:[#allocation2 + $0x54] sm:$0xf]
    %v53 = vld [vmem:[#allocation2 + $0x58] sm:$0xf]
    %v54 = vld [vmem:[#allocation2 + $0x5c] sm:$0xf]
    %v55 = vld [vmem:[#allocation2 + $0x60] sm:$0xf]
    %v56 = vld [vmem:[#allocation2 + $0x64] sm:$0xf]
    %v57 = vld [vmem:[#allocation2 + $0x68] sm:$0xf]
    %v58 = vld [vmem:[#allocation2 + $0x6c] sm:$0xf]
    %v59 = vld [vmem:[#allocation2 + $0x70] sm:$0xf]
    %v60 = vld [vmem:[#allocation2 + $0x74] sm:$0xf]
    %v61 = vld [vmem:[#allocation2 + $0x78] sm:$0xf]
    %v62 = vld [vmem:[#allocation2 + $0x7c] sm:$0xf]
    %v63 = vld [vmem:[#allocation2 + $0x80] sm:$0xf]
    %v64 = vld [vmem:[#allocation2 + $0x84] sm:$0xf]
    %v65 = vld [vmem:[#allocation2 + $0x88] sm:$0xf]
    %v66 = vld [vmem:[#allocation2 + $0x8c] sm:$0xf]
    %v67 = vld [vmem:[#allocation2 + $0x90] sm:$0xf]
    %v68 = vld [vmem:[#allocation2 + $0x94] sm:$0xf]
    %v69 = vld [vmem:[#allocation2 + $0x98] sm:$0xf]
    %v70 = vld [vmem:[#allocation2 + $0x9c] sm:$0xf]
    %v71 = vld [vmem:[#allocation2 + $0xa0] sm:$0xf]
    %v72 = vld [vmem:[#allocation2 + $0xa4] sm:$0xf]
    %v73 = vld [vmem:[#allocation2 + $0xa8] sm:$0xf]
    %v74 = vld [vmem:[#allocation2 + $0xac] sm:$0xf]
    %v75 = vld [vmem:[#allocation2 + $0xb0] sm:$0xf]
    %v76 = vld [vmem:[#allocation2 + $0xb4] sm:$0xf]
    %v77 = vld [vmem:[#allocation2 + $0xb8] sm:$0xf]
    %v78 = vld [vmem:[#allocation2 + $0xbc] sm:$0xf]
    %v79 = vld [vmem:[#allocation2 + $0xc0] sm:$0xf]
    %v80 = vld [vmem:[#allocation2 + $0xc4] sm:$0xf]
    %v81 = vld [vmem:[#allocation2 + $0xc8] sm:$0xf]
    %v82 = vld [vmem:[#allocation2 + $0xcc] sm:$0xf]
    %v83 = vld [vmem:[#allocation2 + $0xd0] sm:$0xf]
    %v84 = vld [vmem:[#allocation2 + $0xd4] sm:$0xf]
    %v85 = vld [vmem:[#allocation2 + $0xd8] sm:$0xf]
    %v86 = vld [vmem:[#allocation2 + $0xdc] sm:$0xf]
    %v87 = vld [vmem:[#allocation2 + $0xe0] sm:$0xf]
    %v88 = vld [vmem:[#allocation2 + $0xe4] sm:$0xf]
    %v89 = vld [vmem:[#allocation2 + $0xe8] sm:$0xf]
    %v90 = vld [vmem:[#allocation2 + $0xec] sm:$0xf]
    %v91 = vld [vmem:[#allocation2 + $0xf0] sm:$0xf]
    %v92 = vld [vmem:[#allocation2 + $0xf4] sm:$0xf]
    %v93 = vld [vmem:[#allocation2 + $0xf8] sm:$0xf]
    %v94 = vld [vmem:[#allocation2 + $0xfc] sm:$0xf]
    %v95 = vld [vmem:[#allocation2 + $0x100] sm:$0xf]
    %v96 = vld [vmem:[#allocation2 + $0x104] sm:$0xf]
    %v97 = vld [vmem:[#allocation2 + $0x108] sm:$0xf]
    %v98 = vld [vmem:[#allocation2 + $0x10c] sm:$0xf]
    %v99 = vld [vmem:[#allocation2 + $0x110] sm:$0xf]
    %v100 = vld [vmem:[#allocation2 + $0x114] sm:$0xf]
    %v101 = vld [vmem:[#allocation2 + $0x118] sm:$0xf]
    %v102 = vld [vmem:[#allocation2 + $0x11c] sm:$0xf]
    %v103 = vld [vmem:[#allocation2 + $0x120] sm:$0xf]
    %v104 = vld [vmem:[#allocation2 + $0x124] sm:$0xf]
    %v105 = vld [vmem:[#allocation2 + $0x128] sm:$0xf]
    %v106 = vld [vmem:[#allocation2 + $0x12c] sm:$0xf]
    %v107 = vld [vmem:[#allocation2 + $0x130] sm:$0xf]
    %v108 = vld [vmem:[#allocation2 + $0x134] sm:$0xf]
    %v109 = vld [vmem:[#allocation2 + $0x138] sm:$0xf]
    %v110 = vld [vmem:[#allocation2 + $0x13c] sm:$0xf]
    %v111 = vld [vmem:[#allocation2 + $0x140] sm:$0xf]
    %v112 = vld [vmem:[#allocation2 + $0x144] sm:$0xf]
    %v113 = vld [vmem:[#allocation2 + $0x148] sm:$0xf]
    %v114 = vld [vmem:[#allocation2 + $0x14c] sm:$0xf]
    %v115 = vld [vmem:[#allocation2 + $0x150] sm:$0xf]
    %v116 = vld [vmem:[#allocation2 + $0x154] sm:$0xf]
    %v117 = vld [vmem:[#allocation2 + $0x158] sm:$0xf]
    %v118 = vld [vmem:[#allocation2 + $0x15c] sm:$0xf]
    %v119 = vld [vmem:[#allocation2 + $0x160] sm:$0xf]
    %v120 = vld [vmem:[#allocation2 + $0x164] sm:$0xf]
    %v121 = vld [vmem:[#allocation2 + $0x168] sm:$0xf]
    %v122 = vld [vmem:[#allocation2 + $0x16c] sm:$0xf]
    %v123 = vld [vmem:[#allocation2 + $0x170] sm:$0xf]
    %v124 = vld [vmem:[#allocation2 + $0x174] sm:$0xf]
    %v125 = vld [vmem:[#allocation2 + $0x178] sm:$0xf]
    %v126 = vld [vmem:[#allocation2 + $0x17c] sm:$0xf]
    %v127 = vld [vmem:[#allocation2 + $0x180] sm:$0xf]
    %v128 = vld [vmem:[#allocation2 + $0x184] sm:$0xf]
    %v129 = vld [vmem:[#allocation2 + $0x188] sm:$0xf]
    %v130 = vld [vmem:[#allocation2 + $0x18c] sm:$0xf]
    %v131 = vld [vmem:[#allocation2 + $0x190] sm:$0xf]
    %v132 = vld [vmem:[#allocation2 + $0x194] sm:$0xf]
    %v133 = vld [vmem:[#allocation2 + $0x198] sm:$0xf]
    %v134 = vld [vmem:[#allocation2 + $0x19c] sm:$0xf]
    %v135 = vld [vmem:[#allocation2 + $0x1a0] sm:$0xf]
    %v136 = vld [vmem:[#allocation2 + $0x1a4] sm:$0xf]
    %v137 = vld [vmem:[#allocation2 + $0x1a8] sm:$0xf]
    %v138 = vld [vmem:[#allocation2 + $0x1ac] sm:$0xf]
    %v139 = vld [vmem:[#allocation2 + $0x1b0] sm:$0xf]
    %v140 = vld [vmem:[#allocation2 + $0x1b4] sm:$0xf]
    %v141 = vld [vmem:[#allocation2 + $0x1b8] sm:$0xf]
    %v142 = vld [vmem:[#allocation2 + $0x1bc] sm:$0xf]
    %v143 = vld [vmem:[#allocation2 + $0x1c0] sm:$0xf]
    %v144 = vld [vmem:[#allocation2 + $0x1c4] sm:$0xf]
    %v145 = vld [vmem:[#allocation2 + $0x1c8] sm:$0xf]
    %v146 = vld [vmem:[#allocation2 + $0x1cc] sm:$0xf]
    %v147 = vld [vmem:[#allocation2 + $0x1d0] sm:$0xf]
    %v148 = vld [vmem:[#allocation2 + $0x1d4] sm:$0xf]
    %v149 = vld [vmem:[#allocation2 + $0x1d8] sm:$0xf]
    %v150 = vld [vmem:[#allocation2 + $0x1dc] sm:$0xf]
    %v151 = vld [vmem:[#allocation2 + $0x1e0] sm:$0xf]
    %v152 = vld [vmem:[#allocation2 + $0x1e4] sm:$0xf]
    %v153 = vld [vmem:[#allocation2 + $0x1e8] sm:$0xf]
    %v154 = vld [vmem:[#allocation2 + $0x1ec] sm:$0xf]
    %v155 = vld [vmem:[#allocation2 + $0x1f0] sm:$0xf]
    %v156 = vld [vmem:[#allocation2 + $0x1f4] sm:$0xf]
    %v157 = vld [vmem:[#allocation2 + $0x1f8] sm:$0xf]
    %v158 = vld [vmem:[#allocation2 + $0x1fc] sm:$0xf]
    %v159 = vld [vmem:[%s2] sm:$0x1]
    %v161 = vlaneseq
    %v162 = vshrl.u32 %v161, 7
    %v163 = vsub.s32 0, %v162
    %v164 = vrot.slane %v159, %v163
    %v167 = vcombine.high %v30, %v30
    %v169 = vunpack.c.l.s4 1966171168
    %v170 = vunpack.c.0.s8 %v169
    %v171 = vlaneseq
    %v172 = vshrl.u32 %v171, 7
    %v173 = vsub.s32 %v170, %v172
    %v174 = vrot.slane %v30, %v173
    %v176 = vunpack.c.l.s4 1966171168
    %v177 = vunpack.c.0.s8 %v176
    %v178 = vlaneseq
    %v179 = vshrl.u32 %v178, 7
    %v180 = vsub.s32 %v177, %v179
    %v181 = vrot.slane %v167, %v180
    %v182 = vcombine.high %v174, %v174
    %v183 = vcombine.high %v181, %v181
    %v185 = vunpack.c.l.s4 1966171168
    %v186 = vunpack.c.0.s8 %v185
    %v187 = vlaneseq
    %v188 = vshrl.u32 %v187, 7
    %v189 = vsub.s32 %v186, %v188
    %v190 = vrot.slane %v174, %v189
    %v192 = vunpack.c.l.s4 1966171168
    %v193 = vunpack.c.0.s8 %v192
    %v194 = vlaneseq
    %v195 = vshrl.u32 %v194, 7
    %v196 = vsub.s32 %v193, %v195
    %v197 = vrot.slane %v181, %v196
    %v199 = vunpack.c.l.s4 1966171168
    %v200 = vunpack.c.0.s8 %v199
    %v201 = vlaneseq
    %v202 = vshrl.u32 %v201, 7
    %v203 = vsub.s32 %v200, %v202
    %v204 = vrot.slane %v182, %v203
    %v206 = vunpack.c.l.s4 1966171168
    %v207 = vunpack.c.0.s8 %v206
    %v208 = vlaneseq
    %v209 = vshrl.u32 %v208, 7
    %v210 = vsub.s32 %v207, %v209
    %v211 = vrot.slane %v183, %v210
    %v212 = vcombine.high %v190, %v190
    %v213 = vcombine.high %v197, %v197
    %v214 = vcombine.high %v204, %v204
    %v215 = vcombine.high %v211, %v211
    %v352 = vunpack.c.l.b16 %v31
    %v353 = vunpack.c.l.b16 %v32
    %v354 = vunpack.c.l.b16 %v33
    %v355 = vunpack.c.l.b16 %v34
    %v356 = vunpack.c.l.b16 %v35
    %v357 = vunpack.c.l.b16 %v36
    %v358 = vunpack.c.l.b16 %v37
    %v359 = vunpack.c.l.b16 %v38
    %v360 = vunpack.c.l.b16 %v39
    %v361 = vunpack.c.l.b16 %v40
    %v362 = vunpack.c.l.b16 %v41
    %v363 = vunpack.c.l.b16 %v42
    %v364 = vunpack.c.l.b16 %v43
    %v365 = vunpack.c.l.b16 %v44
    %v366 = vunpack.c.l.b16 %v45
    %v367 = vunpack.c.l.b16 %v46
    %v368 = vunpack.c.l.b16 %v47
    %v369 = vunpack.c.l.b16 %v48
    %v370 = vunpack.c.l.b16 %v49
    %v371 = vunpack.c.l.b16 %v50
    %v372 = vunpack.c.l.b16 %v51
    %v373 = vunpack.c.l.b16 %v52
    %v374 = vunpack.c.l.b16 %v53
    %v375 = vunpack.c.l.b16 %v54
    %v376 = vunpack.c.l.b16 %v55
    %v377 = vunpack.c.l.b16 %v56
    %v378 = vunpack.c.l.b16 %v57
    %v379 = vunpack.c.l.b16 %v58
    %v380 = vunpack.c.l.b16 %v59
    %v381 = vunpack.c.l.b16 %v60
    %v382 = vunpack.c.l.b16 %v61
    %v383 = vunpack.c.l.b16 %v62
    %v384 = vunpack.c.l.b16 %v63
    %v385 = vunpack.c.l.b16 %v64
    %v386 = vunpack.c.l.b16 %v65
    %v387 = vunpack.c.l.b16 %v66
    %v388 = vunpack.c.l.b16 %v67
    %v389 = vunpack.c.l.b16 %v68
    %v390 = vunpack.c.l.b16 %v69
    %v391 = vunpack.c.l.b16 %v70
    %v392 = vunpack.c.l.b16 %v71
    %v393 = vunpack.c.l.b16 %v72
    %v394 = vunpack.c.l.b16 %v73
    %v395 = vunpack.c.l.b16 %v74
    %v396 = vunpack.c.l.b16 %v75
    %v397 = vunpack.c.l.b16 %v76
    %v398 = vunpack.c.l.b16 %v77
    %v399 = vunpack.c.l.b16 %v78
    %v400 = vunpack.c.l.b16 %v79
    %v401 = vunpack.c.l.b16 %v80
    %v402 = vunpack.c.l.b16 %v81
    %v403 = vunpack.c.l.b16 %v82
    %v404 = vunpack.c.l.b16 %v83
    %v405 = vunpack.c.l.b16 %v84
    %v406 = vunpack.c.l.b16 %v85
    %v407 = vunpack.c.l.b16 %v86
    %v408 = vunpack.c.l.b16 %v87
    %v409 = vunpack.c.l.b16 %v88
    %v410 = vunpack.c.l.b16 %v89
    %v411 = vunpack.c.l.b16 %v90
    %v412 = vunpack.c.l.b16 %v91
    %v413 = vunpack.c.l.b16 %v92
    %v414 = vunpack.c.l.b16 %v93
    %v415 = vunpack.c.l.b16 %v94
    %v416 = vunpack.c.l.b16 %v95
    %v417 = vunpack.c.l.b16 %v96
    %v418 = vunpack.c.l.b16 %v97
    %v419 = vunpack.c.l.b16 %v98
    %v420 = vunpack.c.l.b16 %v99
    %v421 = vunpack.c.l.b16 %v100
    %v422 = vunpack.c.l.b16 %v101
    %v423 = vunpack.c.l.b16 %v102
    %v424 = vunpack.c.l.b16 %v103
    %v425 = vunpack.c.l.b16 %v104
    %v426 = vunpack.c.l.b16 %v105
    %v427 = vunpack.c.l.b16 %v106
    %v428 = vunpack.c.l.b16 %v107
    %v429 = vunpack.c.l.b16 %v108
    %v430 = vunpack.c.l.b16 %v109
    %v431 = vunpack.c.l.b16 %v110
    %v432 = vunpack.c.l.b16 %v111
    %v433 = vunpack.c.l.b16 %v112
    %v434 = vunpack.c.l.b16 %v113
    %v435 = vunpack.c.l.b16 %v114
    %v436 = vunpack.c.l.b16 %v115
    %v437 = vunpack.c.l.b16 %v116
    %v438 = vunpack.c.l.b16 %v117
    %v439 = vunpack.c.l.b16 %v118
    %v440 = vunpack.c.l.b16 %v119
    %v441 = vunpack.c.l.b16 %v120
    %v442 = vunpack.c.l.b16 %v121
    %v443 = vunpack.c.l.b16 %v122
    %v444 = vunpack.c.l.b16 %v123
    %v445 = vunpack.c.l.b16 %v124
    %v446 = vunpack.c.l.b16 %v125
    %v447 = vunpack.c.l.b16 %v126
    %v448 = vunpack.c.l.b16 %v127
    %v449 = vunpack.c.l.b16 %v128
    %v450 = vunpack.c.l.b16 %v129
    %v451 = vunpack.c.l.b16 %v130
    %v452 = vunpack.c.l.b16 %v131
    %v453 = vunpack.c.l.b16 %v132
    %v454 = vunpack.c.l.b16 %v133
    %v455 = vunpack.c.l.b16 %v134
    %v456 = vunpack.c.l.b16 %v135
    %v457 = vunpack.c.l.b16 %v136
    %v458 = vunpack.c.l.b16 %v137
    %v459 = vunpack.c.l.b16 %v138
    %v460 = vunpack.c.l.b16 %v139
    %v461 = vunpack.c.l.b16 %v140
    %v462 = vunpack.c.l.b16 %v141
    %v463 = vunpack.c.l.b16 %v142
    %v464 = vunpack.c.l.b16 %v143
    %v465 = vunpack.c.l.b16 %v144
    %v466 = vunpack.c.l.b16 %v145
    %v467 = vunpack.c.l.b16 %v146
    %v468 = vunpack.c.l.b16 %v147
    %v469 = vunpack.c.l.b16 %v148
    %v470 = vunpack.c.l.b16 %v149
    %v471 = vunpack.c.l.b16 %v150
    %v472 = vunpack.c.l.b16 %v151
    %v473 = vunpack.c.l.b16 %v152
    %v474 = vunpack.c.l.b16 %v153
    %v475 = vunpack.c.l.b16 %v154
    %v476 = vunpack.c.l.b16 %v155
    %v477 = vunpack.c.l.b16 %v156
    %v478 = vunpack.c.l.b16 %v157
    %v479 = vunpack.c.l.b16 %v158
    %v480 = vpack.c.b16 %v353, %v352
    %v481 = vpack.c.b16 %v355, %v354
    %v482 = vpack.c.b16 %v357, %v356
    %v483 = vpack.c.b16 %v359, %v358
    %v484 = vpack.c.b16 %v361, %v360
    %v485 = vpack.c.b16 %v363, %v362
    %v486 = vpack.c.b16 %v365, %v364
    %v487 = vpack.c.b16 %v367, %v366
    %v488 = vpack.c.b16 %v369, %v368
    %v489 = vpack.c.b16 %v371, %v370
    %v490 = vpack.c.b16 %v373, %v372
    %v491 = vpack.c.b16 %v375, %v374
    %v492 = vpack.c.b16 %v377, %v376
    %v493 = vpack.c.b16 %v379, %v378
    %v494 = vpack.c.b16 %v381, %v380
    %v495 = vpack.c.b16 %v383, %v382
    %v496 = vpack.c.b16 %v385, %v384
    %v497 = vpack.c.b16 %v387, %v386
    %v498 = vpack.c.b16 %v389, %v388
    %v499 = vpack.c.b16 %v391, %v390
    %v500 = vpack.c.b16 %v393, %v392
    %v501 = vpack.c.b16 %v395, %v394
    %v502 = vpack.c.b16 %v397, %v396
    %v503 = vpack.c.b16 %v399, %v398
    %v504 = vpack.c.b16 %v401, %v400
    %v505 = vpack.c.b16 %v403, %v402
    %v506 = vpack.c.b16 %v405, %v404
    %v507 = vpack.c.b16 %v407, %v406
    %v508 = vpack.c.b16 %v409, %v408
    %v509 = vpack.c.b16 %v411, %v410
    %v510 = vpack.c.b16 %v413, %v412
    %v511 = vpack.c.b16 %v415, %v414
    %v512 = vpack.c.b16 %v417, %v416
    %v513 = vpack.c.b16 %v419, %v418
    %v514 = vpack.c.b16 %v421, %v420
    %v515 = vpack.c.b16 %v423, %v422
    %v516 = vpack.c.b16 %v425, %v424
    %v517 = vpack.c.b16 %v427, %v426
    %v518 = vpack.c.b16 %v429, %v428
    %v519 = vpack.c.b16 %v431, %v430
    %v520 = vpack.c.b16 %v433, %v432
    %v521 = vpack.c.b16 %v435, %v434
    %v522 = vpack.c.b16 %v437, %v436
    %v523 = vpack.c.b16 %v439, %v438
    %v524 = vpack.c.b16 %v441, %v440
    %v525 = vpack.c.b16 %v443, %v442
    %v526 = vpack.c.b16 %v445, %v444
    %v527 = vpack.c.b16 %v447, %v446
    %v528 = vpack.c.b16 %v449, %v448
    %v529 = vpack.c.b16 %v451, %v450
    %v530 = vpack.c.b16 %v453, %v452
    %v531 = vpack.c.b16 %v455, %v454
    %v532 = vpack.c.b16 %v457, %v456
    %v533 = vpack.c.b16 %v459, %v458
    %v534 = vpack.c.b16 %v461, %v460
    %v535 = vpack.c.b16 %v463, %v462
    %v536 = vpack.c.b16 %v465, %v464
    %v537 = vpack.c.b16 %v467, %v466
    %v538 = vpack.c.b16 %v469, %v468
    %v539 = vpack.c.b16 %v471, %v470
    %v540 = vpack.c.b16 %v473, %v472
    %v541 = vpack.c.b16 %v475, %v474
    %v542 = vpack.c.b16 %v477, %v476
    %v543 = vpack.c.b16 %v479, %v478
    %608 = vmatprep.subr.bf16.mxu0 0
    %609 = vmatpush1.bf16.msra.mxu0 %v480
    %610 = vmatprep.subr.bf16.mxu0 0
    %611 = vmatpush1.bf16.msra.mxu0 %v481
    %612 = vmatprep.subr.bf16.mxu0 0
    %613 = vmatpush1.bf16.msra.mxu0 %v482
    %614 = vmatprep.subr.bf16.mxu0 0
    %615 = vmatpush1.bf16.msra.mxu0 %v483
    %616 = vmatprep.subr.bf16.mxu0 0
    %617 = vmatpush1.bf16.msra.mxu0 %v484
    %618 = vmatprep.subr.bf16.mxu0 0
    %619 = vmatpush1.bf16.msra.mxu0 %v485
    %620 = vmatprep.subr.bf16.mxu0 0
    %621 = vmatpush1.bf16.msra.mxu0 %v486
    %622 = vmatprep.subr.bf16.mxu0 0
    %623 = vmatpush1.bf16.msra.mxu0 %v487
    %624 = vmatprep.subr.bf16.mxu0 0
    %625 = vmatpush1.bf16.msra.mxu0 %v488
    %626 = vmatprep.subr.bf16.mxu0 0
    %627 = vmatpush1.bf16.msra.mxu0 %v489
    %628 = vmatprep.subr.bf16.mxu0 0
    %629 = vmatpush1.bf16.msra.mxu0 %v490
    %630 = vmatprep.subr.bf16.mxu0 0
    %631 = vmatpush1.bf16.msra.mxu0 %v491
    %632 = vmatprep.subr.bf16.mxu0 0
    %633 = vmatpush1.bf16.msra.mxu0 %v492
    %634 = vmatprep.subr.bf16.mxu0 0
    %635 = vmatpush1.bf16.msra.mxu0 %v493
    %636 = vmatprep.subr.bf16.mxu0 0
    %637 = vmatpush1.bf16.msra.mxu0 %v494
    %638 = vmatprep.subr.bf16.mxu0 0
    %639 = vmatpush1.bf16.msra.mxu0 %v495
    %640 = vmatprep.mubr.bf16.mxu0 %v204
    %641 = vmatmul.mubr.bf16.gmra.mrb[0].mxu0 %v190
    %v642 = vpop.f32.mrb[0].mxu0
    %v643 = vadd.f32 %v164, %v642
    %v644 = vpop.f32.mrb[0].mxu0
    %v645 = vpop.f32.mrb[0].mxu0
    %v646 = vpop.f32.mrb[0].mxu0
    %647 = vdwg.mxu0
    %648 = vmatprep.subr.bf16.mxu0 0
    %649 = vmatpush1.bf16.msra.mxu0 %v496
    %650 = vmatprep.subr.bf16.mxu0 0
    %651 = vmatpush1.bf16.msra.mxu0 %v497
    %652 = vmatprep.subr.bf16.mxu0 0
    %653 = vmatpush1.bf16.msra.mxu0 %v498
    %654 = vmatprep.subr.bf16.mxu0 0
    %655 = vmatpush1.bf16.msra.mxu0 %v499
    %656 = vmatprep.subr.bf16.mxu0 0
    %657 = vmatpush1.bf16.msra.mxu0 %v500
    %658 = vmatprep.subr.bf16.mxu0 0
    %659 = vmatpush1.bf16.msra.mxu0 %v501
    %660 = vmatprep.subr.bf16.mxu0 0
    %661 = vmatpush1.bf16.msra.mxu0 %v502
    %662 = vmatprep.subr.bf16.mxu0 0
    %663 = vmatpush1.bf16.msra.mxu0 %v503
    %664 = vmatprep.subr.bf16.mxu0 0
    %665 = vmatpush1.bf16.msra.mxu0 %v504
    %666 = vmatprep.subr.bf16.mxu0 0
    %667 = vmatpush1.bf16.msra.mxu0 %v505
    %668 = vmatprep.subr.bf16.mxu0 0
    %669 = vmatpush1.bf16.msra.mxu0 %v506
    %670 = vmatprep.subr.bf16.mxu0 0
    %671 = vmatpush1.bf16.msra.mxu0 %v507
    %672 = vmatprep.subr.bf16.mxu0 0
    %673 = vmatpush1.bf16.msra.mxu0 %v508
    %674 = vmatprep.subr.bf16.mxu0 0
    %675 = vmatpush1.bf16.msra.mxu0 %v509
    %676 = vmatprep.subr.bf16.mxu0 0
    %677 = vmatpush1.bf16.msra.mxu0 %v510
    %678 = vmatprep.subr.bf16.mxu0 0
    %679 = vmatpush1.bf16.msra.mxu0 %v511
    %680 = vmatprep.mubr.bf16.mxu0 %v214
    %681 = vmatmul.mubr.bf16.gmra.mrb[0].mxu0 %v212
    %v682 = vpop.f32.mrb[0].mxu0
    %v683 = vadd.f32 %v643, %v682
    %v684 = vpop.f32.mrb[0].mxu0
    %v685 = vpop.f32.mrb[0].mxu0
    %v686 = vpop.f32.mrb[0].mxu0
    %687 = vdwg.mxu0
    %688 = vmatprep.subr.bf16.mxu0 0
    %689 = vmatpush1.bf16.msra.mxu0 %v512
    %690 = vmatprep.subr.bf16.mxu0 0
    %691 = vmatpush1.bf16.msra.mxu0 %v513
    %692 = vmatprep.subr.bf16.mxu0 0
    %693 = vmatpush1.bf16.msra.mxu0 %v514
    %694 = vmatprep.subr.bf16.mxu0 0
    %695 = vmatpush1.bf16.msra.mxu0 %v515
    %696 = vmatprep.subr.bf16.mxu0 0
    %697 = vmatpush1.bf16.msra.mxu0 %v516
    %698 = vmatprep.subr.bf16.mxu0 0
    %699 = vmatpush1.bf16.msra.mxu0 %v517
    %700 = vmatprep.subr.bf16.mxu0 0
    %701 = vmatpush1.bf16.msra.mxu0 %v518
    %702 = vmatprep.subr.bf16.mxu0 0
    %703 = vmatpush1.bf16.msra.mxu0 %v519
    %704 = vmatprep.subr.bf16.mxu0 0
    %705 = vmatpush1.bf16.msra.mxu0 %v520
    %706 = vmatprep.subr.bf16.mxu0 0
    %707 = vmatpush1.bf16.msra.mxu0 %v521
    %708 = vmatprep.subr.bf16.mxu0 0
    %709 = vmatpush1.bf16.msra.mxu0 %v522
    %710 = vmatprep.subr.bf16.mxu0 0
    %711 = vmatpush1.bf16.msra.mxu0 %v523
    %712 = vmatprep.subr.bf16.mxu0 0
    %713 = vmatpush1.bf16.msra.mxu0 %v524
    %714 = vmatprep.subr.bf16.mxu0 0
    %715 = vmatpush1.bf16.msra.mxu0 %v525
    %716 = vmatprep.subr.bf16.mxu0 0
    %717 = vmatpush1.bf16.msra.mxu0 %v526
    %718 = vmatprep.subr.bf16.mxu0 0
    %719 = vmatpush1.bf16.msra.mxu0 %v527
    %720 = vmatprep.mubr.bf16.mxu0 %v211
    %721 = vmatmul.mubr.bf16.gmra.mrb[0].mxu0 %v197
    %v722 = vpop.f32.mrb[0].mxu0
    %v723 = vadd.f32 %v683, %v722
    %v724 = vpop.f32.mrb[0].mxu0
    %v725 = vpop.f32.mrb[0].mxu0
    %v726 = vpop.f32.mrb[0].mxu0
    %727 = vdwg.mxu0
    %728 = vmatprep.subr.bf16.mxu0 0
    %729 = vmatpush1.bf16.msra.mxu0 %v528
    %730 = vmatprep.subr.bf16.mxu0 0
    %731 = vmatpush1.bf16.msra.mxu0 %v529
    %732 = vmatprep.subr.bf16.mxu0 0
    %733 = vmatpush1.bf16.msra.mxu0 %v530
    %734 = vmatprep.subr.bf16.mxu0 0
    %735 = vmatpush1.bf16.msra.mxu0 %v531
    %736 = vmatprep.subr.bf16.mxu0 0
    %737 = vmatpush1.bf16.msra.mxu0 %v532
    %738 = vmatprep.subr.bf16.mxu0 0
    %739 = vmatpush1.bf16.msra.mxu0 %v533
    %740 = vmatprep.subr.bf16.mxu0 0
    %741 = vmatpush1.bf16.msra.mxu0 %v534
    %742 = vmatprep.subr.bf16.mxu0 0
    %743 = vmatpush1.bf16.msra.mxu0 %v535
    %744 = vmatprep.subr.bf16.mxu0 0
    %745 = vmatpush1.bf16.msra.mxu0 %v536
    %746 = vmatprep.subr.bf16.mxu0 0
    %747 = vmatpush1.bf16.msra.mxu0 %v537
    %748 = vmatprep.subr.bf16.mxu0 0
    %749 = vmatpush1.bf16.msra.mxu0 %v538
    %750 = vmatprep.subr.bf16.mxu0 0
    %751 = vmatpush1.bf16.msra.mxu0 %v539
    %752 = vmatprep.subr.bf16.mxu0 0
    %753 = vmatpush1.bf16.msra.mxu0 %v540
    %754 = vmatprep.subr.bf16.mxu0 0
    %755 = vmatpush1.bf16.msra.mxu0 %v541
    %756 = vmatprep.subr.bf16.mxu0 0
    %757 = vmatpush1.bf16.msra.mxu0 %v542
    %758 = vmatprep.subr.bf16.mxu0 0
    %759 = vmatpush1.bf16.msra.mxu0 %v543
    %760 = vmatprep.mubr.bf16.mxu0 %v215
    %761 = vmatmul.mubr.bf16.gmra.mrb[0].mxu0 %v213
    %v762 = vpop.f32.mrb[0].mxu0
    %v763 = vadd.f32 %v723, %v762
    %v764 = vpop.f32.mrb[0].mxu0
    %v765 = vpop.f32.mrb[0].mxu0
    %v766 = vpop.f32.mrb[0].mxu0
    %767 = vdwg.mxu0
    %768 = vst [vmem:[#allocation5] sm:$0x3] %v763
    // Predicated region
    $region18: #{forward_precomposed.1} parent=1 // pred_check
      _
    $region19: #{forward_precomposed.1} parent=1 // pred_check_branch
      %770 = sbr.rel (0) target = $region21
    $region20: #{forward_precomposed.1} parent=1 // pred_region
      %s772 = ssub.s32 32, 32
      %773 = vsyncadd [#allocation4], %s772
      %s775 = sshll.u32 [#allocation5], 4
      %s776 = int_to_ptr.vmem [resolvable:$true] %s775
      %778 = dma.vmem_to_hbm [thread:$0]  %s776, 32, %s3, [#allocation4]
    $region21: #{forward_precomposed.1} parent=1 // pred_fallthru
      _
    // Predicated region
    $region22: #{forward_precomposed.1} parent=1 // pred_check
      _
    $region23: #{forward_precomposed.1} parent=1 // pred_check_branch
      %780 = sbr.rel (0) target = $region25
    $region24: #{forward_precomposed.1} parent=1 // pred_region
      %781 = dma.done [#allocation4], 32
    $region25: #{forward_precomposed.1} parent=1 // pred_fallthru
      _
    %782 = vsyncpa [#allocation3], 1
    %783 = vsyncpa [#allocation4], 1

</llo_original>
